<compile_context>
chip_gen: v7x
topology: tpu7x:2x2x1
jax: 0.10.0
libtpu: 0.0.40
codegen_flags: <defaults>
</compile_context>

<pallas_src>
import jax
import jax.numpy as jnp
from jax.experimental import pallas as pl
from jax.experimental.pallas import tpu as pltpu


def _round_up(x, m):
    return ((x + m - 1) // m) * m


def _vmem_cap_bytes():
    """Generation-aware VMEM budget: ~75% of physical per-core VMEM."""
    try:
        phys = int(pltpu.get_tpu_info().vmem_capacity_bytes)
    except Exception:
        phys = 64 << 20          # assume the smallest (v7x per-TC) when unknown
    # ~48 MiB on v7x (64 MiB physical), ~96 MiB on v5e/v6e (128 MiB physical)
    return min(int(phys * 3 // 4), 110 << 20)


def _vmem_limit(need_bytes, cap):
    return int(min(cap, max(32 << 20, need_bytes + (4 << 20))))


def _is_v5e():
    try:
        kind = jax.devices()[0].device_kind.lower()
    except Exception:
        return False
    return ("v5 lite" in kind) or ("v5lite" in kind) or ("v5e" in kind)


# ----------------------------------------------------------------------------
# Kernel 1: codebook projection + L2 normalization, one pass over the codebook.
#   cb_proj(codebook) = codebook @ W.T + b   -> proj   (N, D) f32  (for z_q gather)
#   F.normalize(cb_proj(codebook))           -> normed (N, D) bf16 (for the scores)
# ----------------------------------------------------------------------------
def _cb_proj_kernel(cb_ref, wt_ref, b_ref, proj_ref, normed_ref):
    p = jnp.dot(cb_ref[...], wt_ref[...], preferred_element_type=jnp.float32) + b_ref[...]
    proj_ref[...] = p
    # F.normalize: v / max(|v|, 1e-12)  ==  v * rsqrt(max(|v|^2, 1e-24))  (rsqrt on EUP)
    inv = jax.lax.rsqrt(jnp.maximum(jnp.sum(p * p, axis=1, keepdims=True), 1e-24))
    normed_ref[...] = (p * inv).astype(normed_ref.dtype)


def project_codebook(codebook_weight, w_proj, b_proj):
    n, dc = codebook_weight.shape
    d = w_proj.shape[0]
    wt = jnp.transpose(w_proj).astype(jnp.float32)      # (Dc, D)
    b = b_proj.reshape(1, d).astype(jnp.float32)
    cb = codebook_weight.astype(jnp.float32)

    if n <= 1024:
        tn, npad = n, n
    else:
        tn = 512
        npad = _round_up(n, tn)
        if npad != n:
            cb = jnp.pad(cb, ((0, npad - n), (0, 0)))

    cap = _vmem_cap_bytes()
    need = 2 * (tn * dc * 4 + dc * d * 4 + d * 4 + tn * d * 4 + tn * d * 2)
    proj, normed = pl.pallas_call(
        _cb_proj_kernel,
        out_shape=(
            jax.ShapeDtypeStruct((npad, d), jnp.float32),
            jax.ShapeDtypeStruct((npad, d), jnp.bfloat16),
        ),
        grid=(npad // tn,),
        in_specs=[
            pl.BlockSpec((tn, dc), lambda i: (i, 0)),
            pl.BlockSpec((dc, d), lambda i: (0, 0)),
            pl.BlockSpec((1, d), lambda i: (0, 0)),
        ],
        out_specs=(
            pl.BlockSpec((tn, d), lambda i: (i, 0)),
            pl.BlockSpec((tn, d), lambda i: (i, 0)),
        ),
        compiler_params=pltpu.CompilerParams(
            dimension_semantics=("parallel",), vmem_limit_bytes=_vmem_limit(need, cap)
        ),
    )(cb, wt, b)
    if npad != n:
        # padded rows would project to the bias (and normalize to b/|b|) -> drop them
        proj, normed = proj[:n], normed[:n]
    return proj, normed


# ----------------------------------------------------------------------------
# Kernel 2: nearest-code indices, directly in the (B, D, T) layout.
#   scores = cbn(N, D) @ e(D, TT)       bf16 operands, f32 MXU accumulation
#   idx[t] = first argmax_n scores[n,t] (positive per-column scale of e does not
#            change the argmax, so e is NOT normalized; c is normalized once in
#            kernel 1 -> argmax(scores) == argmin(cdist) of the reference)
# ----------------------------------------------------------------------------
def _vq_idx_kernel(z_ref, cbn_ref, idx_ref):
    e = z_ref[0]                                            # (D, TT) f32, z_e columns
    scores = jnp.dot(cbn_ref[...], e.astype(jnp.bfloat16),
                     preferred_element_type=jnp.float32)    # (N, TT)
    n = scores.shape[0]
    m = jnp.max(scores, axis=0, keepdims=True)              # (1, TT)
    rows = jax.lax.broadcasted_iota(jnp.int32, scores.shape, 0)
    cand = jnp.where(scores >= m, rows, jnp.int32(n))       # losers -> sentinel n
    idx = jnp.min(cand, axis=0).astype(jnp.int32)           # (TT,), lane-dense
    idx_ref[...] = idx.reshape(1, 1, idx.shape[0])


def _pick_tt(n, d, tp, cap):
    base = 128 if _is_v5e() else 256
    if d <= 128:
        # tiny contraction depth: per-step overhead / DMA bound -> bigger time tiles
        base = 256 if _is_v5e() else 512
    tt = base

    def footprint(t):
        # resident bf16 codebook (double-buffered) + streamed z/idx + (N, t) scores
        return 2 * n * d * 2 + 2 * (d * t * 4 + t * 4) + n * t * 4

    while tt > 128 and footprint(tt) > cap // 2:
        tt //= 2
    tt = min(tt, _round_up(max(tp, 1), 128))   # do not over-pad short time axes
    return max(tt, 128)


def vq_indices(z_e, cb_normalized, tt=None):
    B, D, Tp = z_e.shape
    N, D2 = cb_normalized.shape
    assert D == D2
    cap = _vmem_cap_bytes()
    if tt is None:
        tt = _pick_tt(N, D, Tp, cap)

    tpad = _round_up(Tp, tt)
    z_e = z_e.astype(jnp.float32)
    if tpad != Tp:
        # zero-padded tail columns pick code 0 and are sliced off below
        z_e = jnp.pad(z_e, ((0, 0), (0, 0), (0, tpad - Tp)))
    g = tpad // tt

    need = 2 * N * D * 2 + 2 * (D * tt * 4 + tt * 4) + N * tt * 4
    idx = pl.pallas_call(
        _vq_idx_kernel,
        out_shape=jax.ShapeDtypeStruct((B, 1, tpad), jnp.int32),
        grid=(B, g),
        in_specs=[
            pl.BlockSpec((1, D, tt), lambda b, t: (b, 0, t)),
            # Resident bf16 normalized codebook (constant index -> no repeated DMA).
            # TODO(synk): single-buffer it (pipeline_mode=pl.Buffered(1)) and, for
            # codebooks approaching the VMEM budget, tile N over a trailing
            # "arbitrary" grid axis with a running best-score/best-index in scratch.
            pl.BlockSpec((N, D), lambda b, t: (0, 0)),
        ],
        out_specs=pl.BlockSpec((1, 1, tt), lambda b, t: (b, 0, t)),
        compiler_params=pltpu.CompilerParams(
            dimension_semantics=("parallel", "parallel"),
            vmem_limit_bytes=_vmem_limit(need, cap),
        ),
    )(z_e, cb_normalized)
    return idx.reshape(B, tpad)[:, :Tp]


# ----------------------------------------------------------------------------
# Forward pass glue (pooling / gather / losses / straight-through value)
# ----------------------------------------------------------------------------
def vector_quantize_llm_forward(z, codebook_weight, w_proj, b_proj, stride=1):
    B, D, T = z.shape
    if stride > 1:
        # avg_pool1d(z, stride, stride)
        Tp = T // stride
        z = z[:, :, : Tp * stride].reshape(B, D, Tp, stride).mean(axis=-1)
    else:
        Tp = T

    z_e = z.astype(jnp.float32)                          # use_cblinear=True: z_e = z
    cb_projected, cb_normalized = project_codebook(codebook_weight, w_proj, b_proj)

    # nearest-code indices straight from the (B, D, T) layout (no activation transpose)
    indices = vq_indices(z_e, cb_normalized)             # (B, Tp) int32

    # z_q = decode_code(indices): gather of the UN-normalized projected codebook rows,
    # produced directly in (B, D, Tp) layout (gather from the small (D, N) table).
    # TODO(synk): the (N, D)->(D, N) codebook transpose could be emitted by kernel 1
    # on the otherwise-idle XLU slot instead of here.
    cbp_t = jnp.transpose(cb_projected)                  # (D, N), codebook-sized only
    z_q = jax.vmap(lambda ib: jnp.take(cbp_t, ib, axis=1))(indices)   # (B, D, Tp)

    # mse(z_e, z_q, reduction='none').mean([1, 2]); forward values of both losses match
    per_batch = jnp.mean((z_e - z_q) ** 2, axis=(1, 2))
    commitment_loss = per_batch
    codebook_loss = per_batch                            # detach only changes gradients

    # TODO(synk): straight-through estimator z_e + (z_q - z_e).detach() is a
    # gradient-only transform; the forward value equals z_q, returned here.
    if stride > 1:
        z_q = jnp.repeat(z_q, stride, axis=-1)           # repeat_interleave
    return z_q, indices, commitment_loss, codebook_loss


if __name__ == "__main__":
    key = jax.random.PRNGKey(0)
    B, D, T = 2, 32, 64          # batch, input_dim, time
    N, Dc = 256, 16              # codebook_size, codebook_dim ("checkpoint" shape)
    k1, k2, k3, k4 = jax.random.split(key, 4)
    z = jax.random.normal(k1, (B, D, T), dtype=jnp.float32)
    codebook = jax.random.normal(k2, (N, Dc), dtype=jnp.float32)                 # Embedding weight
    w_proj = jax.random.normal(k3, (D, Dc), dtype=jnp.float32) / jnp.sqrt(Dc)    # cb_proj weight
    b_proj = jax.random.normal(k4, (D,), dtype=jnp.float32) * 0.01               # cb_proj bias

    z_q, indices, commit_l, cb_l = vector_quantize_llm_forward(
        z, codebook, w_proj, b_proj, stride=1
    )
    jax.block_until_ready((z_q, indices, commit_l, cb_l))

    # ---- pure-JAX reference check (tolerant to bf16 score rounding on near-ties) ----
    cb_p_ref = codebook @ w_proj.T + b_proj
    enc_ref = jnp.transpose(z, (0, 2, 1)).reshape(B * T, D)
    e_n = enc_ref / jnp.maximum(jnp.linalg.norm(enc_ref, axis=1, keepdims=True), 1e-12)
    c_n = cb_p_ref / jnp.maximum(jnp.linalg.norm(cb_p_ref, axis=1, keepdims=True), 1e-12)
    scores_ref = e_n @ c_n.T                                   # argmax(scores) == argmin(dist)

    idx_flat = indices.reshape(-1)
    best = scores_ref.max(axis=1)
    picked = jnp.take_along_axis(scores_ref, idx_flat[:, None], axis=1)[:, 0]
    assert bool(jnp.all(picked >= best - 5e-2)), "selected codes not near-optimal"

    # z_q must be the gather of the selected (un-normalized, projected) codebook rows
    zq_gather = jnp.transpose(cb_p_ref[indices], (0, 2, 1))
    assert jnp.allclose(z_q, zq_gather, atol=1e-4, rtol=1e-4)

    loss_ref = ((z - zq_gather) ** 2).mean(axis=(1, 2))
    assert jnp.allclose(commit_l, loss_ref, atol=1e-4, rtol=1e-4)
    assert jnp.allclose(cb_l, loss_ref, atol=1e-4, rtol=1e-4)
    print("KERNEL_OK")
</pallas_src>

<mosaic_0001>
module attributes {stable_mosaic.version = 11 : i64} {
  func.func @_cb_proj_kernel(%arg0: i32, %arg1: memref<256x16xf32, #tpu.memory_space<vmem>>, %arg2: memref<16x32xf32, #tpu.memory_space<vmem>>, %arg3: memref<1x32xf32, #tpu.memory_space<vmem>>, %arg4: memref<256x32xf32, #tpu.memory_space<vmem>>, %arg5: memref<256x32xbf16, #tpu.memory_space<vmem>>) attributes {dimension_semantics = [#tpu.dimension_semantics<parallel>], iteration_bounds = array<i64: 1>, scalar_prefetch = 0 : i64, scratch_operands = 0 : i64, tpu.core_type = #tpu.core_type<tc>, window_params = [{transform_indices = @transform_0, window_bounds = array<i64: 256, 16>}, {pipeline_mode = #tpu.pipeline_mode<synchronous>, transform_indices = @transform_1, window_bounds = array<i64: 16, 32>}, {pipeline_mode = #tpu.pipeline_mode<synchronous>, transform_indices = @transform_2, window_bounds = array<i64: 1, 32>}, {transform_indices = @transform_3, window_bounds = array<i64: 256, 32>}, {transform_indices = @transform_4, window_bounds = array<i64: 256, 32>}]} {
    %c0 = arith.constant 0 : index
    %c0_0 = arith.constant 0 : index
    %0 = vector.load %arg1[%c0, %c0_0] : memref<256x16xf32, #tpu.memory_space<vmem>>, vector<256x16xf32>
    %c0_1 = arith.constant 0 : index
    %c0_2 = arith.constant 0 : index
    %1 = vector.load %arg2[%c0_1, %c0_2] : memref<16x32xf32, #tpu.memory_space<vmem>>, vector<16x32xf32>
    %cst = arith.constant dense<0.000000e+00> : vector<256x32xf32>
    %2 = tpu.matmul %0, %1, %cst {dimension_numbers = #tpu.dot_dimension_numbers<[1], [0], [0], [1], [0, 0, 1, 1], [], []>} : vector<256x16xf32>, vector<16x32xf32>, vector<256x32xf32> -> vector<256x32xf32>
    %c0_3 = arith.constant 0 : index
    %c0_4 = arith.constant 0 : index
    %3 = vector.load %arg3[%c0_3, %c0_4] : memref<1x32xf32, #tpu.memory_space<vmem>>, vector<1x32xf32>
    %4 = vector.broadcast %3 : vector<1x32xf32> to vector<256x32xf32>
    %5 = arith.addf %2, %4 : vector<256x32xf32>
    %c0_5 = arith.constant 0 : index
    %c0_6 = arith.constant 0 : index
    %6 = vector.load %arg4[%c0_5, %c0_6] : memref<256x32xf32, #tpu.memory_space<vmem>>, vector<256x32xf32>
    tpu.vector_store %arg4[%c0_5, %c0_6], %5 {strides = array<i32>} : memref<256x32xf32, #tpu.memory_space<vmem>>, vector<256x32xf32>,
    %7 = arith.mulf %5, %5 : vector<256x32xf32>
    %cst_7 = arith.constant dense<0.000000e+00> : vector<256xf32>
    %8 = vector.multi_reduction <add>, %7, %cst_7 [1] : vector<256x32xf32> to vector<256xf32>
    %9 = vector.shape_cast %8 : vector<256xf32> to vector<256x1xf32>
    %cst_8 = arith.constant 1.000000e-24 : f32
    %10 = vector.broadcast %cst_8 : f32 to vector<256x1xf32>
    %11 = arith.maximumf %9, %10 : vector<256x1xf32>
    %12 = math.rsqrt %11 : vector<256x1xf32>
    %13 = vector.broadcast %12 : vector<256x1xf32> to vector<256x32xf32>
    %14 = arith.mulf %5, %13 : vector<256x32xf32>
    %15 = arith.truncf %14 : vector<256x32xf32> to vector<256x32xbf16>
    %c0_9 = arith.constant 0 : index
    %c0_10 = arith.constant 0 : index
    %16 = vector.load %arg5[%c0_9, %c0_10] : memref<256x32xbf16, #tpu.memory_space<vmem>>, vector<256x32xbf16>
    tpu.vector_store %arg5[%c0_9, %c0_10], %15 {strides = array<i32>} : memref<256x32xbf16, #tpu.memory_space<vmem>>, vector<256x32xbf16>,
    return
  }
  func.func @transform_0(%arg0: i32) -> (i32, i32) {
    %c0_i32 = arith.constant 0 : i32
    %c0_i32_0 = arith.constant 0 : i32
    return %arg0, %c0_i32 : i32, i32
  }
  func.func @transform_1(%arg0: i32) -> (i32, i32) {
    %c0_i32 = arith.constant 0 : i32
    %c0_i32_0 = arith.constant 0 : i32
    %c0_i32_1 = arith.constant 0 : i32
    return %c0_i32, %c0_i32_0 : i32, i32
  }
  func.func @transform_2(%arg0: i32) -> (i32, i32) {
    %c0_i32 = arith.constant 0 : i32
    %c0_i32_0 = arith.constant 0 : i32
    %c0_i32_1 = arith.constant 0 : i32
    return %c0_i32, %c0_i32_0 : i32, i32
  }
  func.func @transform_3(%arg0: i32) -> (i32, i32) {
    %c0_i32 = arith.constant 0 : i32
    %c0_i32_0 = arith.constant 0 : i32
    return %arg0, %c0_i32 : i32, i32
  }
  func.func @transform_4(%arg0: i32) -> (i32, i32) {
    %c0_i32 = arith.constant 0 : i32
    %c0_i32_0 = arith.constant 0 : i32
    return %arg0, %c0_i32 : i32, i32
  }
}

</mosaic_0001>

<llo_original>
// kernel: tpu_custom_call.1
$region0: #{tpu_custom_call.1}
  #allocation0 [shape = 'u32[]', space=smem, size = 0x4, offset = 0x4, fixed_abs, tag = 'smem constant byte address 0x4 - core index']
  #allocation1 [shape = 'u32[144,128]{1,0:T(1,128)}', space=vmem, size = 0x12000, scoped, tag = 'internal scratch']
  %s0 = inlined_call_operand.vmem [shape: f32[256,16], index: 0, kind: input, shape index: {}]
  %s1 = inlined_call_operand.vmem [shape: f32[16,32], index: 1, kind: input, shape index: {}]
  %s2 = inlined_call_operand.vmem [shape: f32[1,32], index: 2, kind: input, shape index: {}]
  %s3 = inlined_call_operand.vmem [shape: f32[256,32], index: 3, kind: output, shape index: {0}]
  %s4 = inlined_call_operand.vmem [shape: bf16[256,32], index: 4, kind: output, shape index: {1}]
  %5 = xla_tuple %s3, %s4
  %s6 = sld [smem:[#allocation0]]
  $region30: #{tpu_custom_call.1} parent=0
    _
  %s8 = ssub.s32 1, %s6
  %s9 = scalar_select 0, %s8, %s6
  // Predicated region
  $region2: #{tpu_custom_call.1} parent=0 // pred_check
    _
  $region3: #{tpu_custom_call.1} parent=0 // pred_check_branch
    %11 = sbr.rel (0) target = $region5
  $region4: #{tpu_custom_call.1} parent=0 // pred_region
    _
  $region5: #{tpu_custom_call.1} parent=0 // pred_fallthru
    _
  // Predicated region
  $region6: #{tpu_custom_call.1} parent=0 // pred_check
    _
  $region7: #{tpu_custom_call.1} parent=0 // pred_check_branch
    %13 = sbr.rel (0) target = $region9
  $region8: #{tpu_custom_call.1} parent=0 // pred_region
    _
  $region9: #{tpu_custom_call.1} parent=0 // pred_fallthru
    _
  // Predicated region
  $region10: #{tpu_custom_call.1} parent=0 // pred_check
    _
  $region11: #{tpu_custom_call.1} parent=0 // pred_check_branch
    %15 = sbr.rel (0) target = $region13
  $region12: #{tpu_custom_call.1} parent=0 // pred_region
    _
  $region13: #{tpu_custom_call.1} parent=0 // pred_fallthru
    _
  %v16 = vld [vmem:[%s0] sm:$0xff]
  %v17 = vld [vmem:[%s0 + $0x8] sm:$0xff]
  %v18 = vld [vmem:[%s0 + $0x10] sm:$0xff]
  %v19 = vld [vmem:[%s0 + $0x18] sm:$0xff]
  %v20 = vld [vmem:[%s0 + $0x20] sm:$0xff]
  %v21 = vld [vmem:[%s0 + $0x28] sm:$0xff]
  %v22 = vld [vmem:[%s0 + $0x30] sm:$0xff]
  %v23 = vld [vmem:[%s0 + $0x38] sm:$0xff]
  %v24 = vld [vmem:[%s0 + $0x40] sm:$0xff]
  %v25 = vld [vmem:[%s0 + $0x48] sm:$0xff]
  %v26 = vld [vmem:[%s0 + $0x50] sm:$0xff]
  %v27 = vld [vmem:[%s0 + $0x58] sm:$0xff]
  %v28 = vld [vmem:[%s0 + $0x60] sm:$0xff]
  %v29 = vld [vmem:[%s0 + $0x68] sm:$0xff]
  %v30 = vld [vmem:[%s0 + $0x70] sm:$0xff]
  %v31 = vld [vmem:[%s0 + $0x78] sm:$0xff]
  %v32 = vld [vmem:[%s0 + $0x80] sm:$0xff]
  %v33 = vld [vmem:[%s0 + $0x88] sm:$0xff]
  %v34 = vld [vmem:[%s0 + $0x90] sm:$0xff]
  %v35 = vld [vmem:[%s0 + $0x98] sm:$0xff]
  %v36 = vld [vmem:[%s0 + $0xa0] sm:$0xff]
  %v37 = vld [vmem:[%s0 + $0xa8] sm:$0xff]
  %v38 = vld [vmem:[%s0 + $0xb0] sm:$0xff]
  %v39 = vld [vmem:[%s0 + $0xb8] sm:$0xff]
  %v40 = vld [vmem:[%s0 + $0xc0] sm:$0xff]
  %v41 = vld [vmem:[%s0 + $0xc8] sm:$0xff]
  %v42 = vld [vmem:[%s0 + $0xd0] sm:$0xff]
  %v43 = vld [vmem:[%s0 + $0xd8] sm:$0xff]
  %v44 = vld [vmem:[%s0 + $0xe0] sm:$0xff]
  %v45 = vld [vmem:[%s0 + $0xe8] sm:$0xff]
  %v46 = vld [vmem:[%s0 + $0xf0] sm:$0xff]
  %v47 = vld [vmem:[%s0 + $0xf8] sm:$0xff]
  %v48 = vld [vmem:[%s1] sm:$0xff]
  %v49 = vld [vmem:[%s1 + $0x8] sm:$0xff]
  %v50 = vld [vmem:[%s2] sm:$0x1]
  %v52 = vlaneseq
  %v53 = vshrl.u32 %v52, 7
  %v54 = vsub.s32 0, %v53
  %v55 = vrot.slane %v50, %v54
  %vm57 = vcmask 130048
  %v59 = vsel %vm57, %v16, 0
  %v62 = vsel %vm57, %v17, 0
  %v65 = vsel %vm57, %v18, 0
  %v68 = vsel %vm57, %v19, 0
  %v71 = vsel %vm57, %v20, 0
  %v74 = vsel %vm57, %v21, 0
  %v77 = vsel %vm57, %v22, 0
  %v80 = vsel %vm57, %v23, 0
  %v83 = vsel %vm57, %v24, 0
  %v86 = vsel %vm57, %v25, 0
  %v89 = vsel %vm57, %v26, 0
  %v92 = vsel %vm57, %v27, 0
  %v95 = vsel %vm57, %v28, 0
  %v98 = vsel %vm57, %v29, 0
  %v101 = vsel %vm57, %v30, 0
  %v104 = vsel %vm57, %v31, 0
  %v107 = vsel %vm57, %v32, 0
  %v110 = vsel %vm57, %v33, 0
  %v113 = vsel %vm57, %v34, 0
  %v116 = vsel %vm57, %v35, 0
  %v119 = vsel %vm57, %v36, 0
  %v122 = vsel %vm57, %v37, 0
  %v125 = vsel %vm57, %v38, 0
  %v128 = vsel %vm57, %v39, 0
  %v131 = vsel %vm57, %v40, 0
  %v134 = vsel %vm57, %v41, 0
  %v137 = vsel %vm57, %v42, 0
  %v140 = vsel %vm57, %v43, 0
  %v143 = vsel %vm57, %v44, 0
  %v146 = vsel %vm57, %v45, 0
  %v149 = vsel %vm57, %v46, 0
  %v152 = vsel %vm57, %v47, 0
  %154 = vmatprep.subr.mxu0 0.0
  %155 = vmatpush1.msra.mxu0 %v48
  %156 = vmatprep.subr.mxu0 0.0
  %157 = vmatpush1.msra.mxu0 %v49
  %158 = vmatprep.subr.mxu0 0.0
  %159 = vmatpush1.msra.mxu0 0.0
  %160 = vmatprep.subr.mxu0 0.0
  %161 = vmatpush1.msra.mxu0 0.0
  %162 = vmatprep.subr.mxu0 0.0
  %163 = vmatpush1.msra.mxu0 0.0
  %164 = vmatprep.subr.mxu0 0.0
  %165 = vmatpush1.msra.mxu0 0.0
  %166 = vmatprep.subr.mxu0 0.0
  %167 = vmatpush1.msra.mxu0 0.0
  %168 = vmatprep.subr.mxu0 0.0
  %169 = vmatpush1.msra.mxu0 0.0
  %170 = vmatprep.subr.mxu0 0.0
  %171 = vmatpush1.msra.mxu0 0.0
  %172 = vmatprep.subr.mxu0 0.0
  %173 = vmatpush1.msra.mxu0 0.0
  %174 = vmatprep.subr.mxu0 0.0
  %175 = vmatpush1.msra.mxu0 0.0
  %176 = vmatprep.subr.mxu0 0.0
  %177 = vmatpush1.msra.mxu0 0.0
  %178 = vmatprep.subr.mxu0 0.0
  %179 = vmatpush1.msra.mxu0 0.0
  %180 = vmatprep.subr.mxu0 0.0
  %181 = vmatpush1.msra.mxu0 0.0
  %182 = vmatprep.subr.mxu0 0.0
  %183 = vmatpush1.msra.mxu0 0.0
  %184 = vmatprep.subr.mxu0 0.0
  %185 = vmatpush1.msra.mxu0 0.0
  %186 = vmatprep.subr.mxu0 0.0
  %187 = vmatpush1.msra.mxu0 0.0
  %188 = vmatprep.subr.mxu0 0.0
  %189 = vmatpush1.msra.mxu0 0.0
  %190 = vmatprep.subr.mxu0 0.0
  %191 = vmatpush1.msra.mxu0 0.0
  %192 = vmatprep.subr.mxu0 0.0
  %193 = vmatpush1.msra.mxu0 0.0
  %194 = vmatprep.subr.mxu0 0.0
  %195 = vmatpush1.msra.mxu0 0.0
  %196 = vmatprep.subr.mxu0 0.0
  %197 = vmatpush1.msra.mxu0 0.0
  %198 = vmatprep.subr.mxu0 0.0
  %199 = vmatpush1.msra.mxu0 0.0
  %200 = vmatprep.subr.mxu0 0.0
  %201 = vmatpush1.msra.mxu0 0.0
  %202 = vmatprep.subr.mxu0 0.0
  %203 = vmatpush1.msra.mxu0 0.0
  %204 = vmatprep.subr.mxu0 0.0
  %205 = vmatpush1.msra.mxu0 0.0
  %206 = vmatprep.subr.mxu0 0.0
  %207 = vmatpush1.msra.mxu0 0.0
  %208 = vmatprep.subr.mxu0 0.0
  %209 = vmatpush1.msra.mxu0 0.0
  %210 = vmatprep.subr.mxu0 0.0
  %211 = vmatpush1.msra.mxu0 0.0
  %212 = vmatprep.subr.mxu0 0.0
  %213 = vmatpush1.msra.mxu0 0.0
  %214 = vmatprep.subr.mxu0 0.0
  %215 = vmatpush1.msra.mxu0 0.0
  %216 = vmatprep.subr.mxu0 0.0
  %217 = vmatpush1.msra.mxu0 0.0
  %218 = vmatprep.mubr.f32.mxu0 0.0
  %219 = vmatmul.mubr.f32.gmra.mrb[0].mxu0 %v59
  %v220 = vpop.f32.mrb[0].mxu0
  %v221 = vadd.f32 %v55, %v220
  %v222 = vpop.f32.mrb[0].mxu0
  %223 = vmatprep.mubr.f32.mxu0 0.0
  %224 = vmatmul.mubr.f32.gmra.mrb[0].mxu0 %v62
  %v225 = vpop.f32.mrb[0].mxu0
  %v226 = vadd.f32 %v55, %v225
  %v227 = vpop.f32.mrb[0].mxu0
  %228 = vmatprep.mubr.f32.mxu0 0.0
  %229 = vmatmul.mubr.f32.gmra.mrb[0].mxu0 %v65
  %v230 = vpop.f32.mrb[0].mxu0
  %v231 = vadd.f32 %v55, %v230
  %v232 = vpop.f32.mrb[0].mxu0
  %233 = vmatprep.mubr.f32.mxu0 0.0
  %234 = vmatmul.mubr.f32.gmra.mrb[0].mxu0 %v68
  %v235 = vpop.f32.mrb[0].mxu0
  %v236 = vadd.f32 %v55, %v235
  %v237 = vpop.f32.mrb[0].mxu0
  %238 = vmatprep.mubr.f32.mxu0 0.0
  %239 = vmatmul.mubr.f32.gmra.mrb[0].mxu0 %v71
  %v240 = vpop.f32.mrb[0].mxu0
  %v241 = vadd.f32 %v55, %v240
  %v242 = vpop.f32.mrb[0].mxu0
  %243 = vmatprep.mubr.f32.mxu0 0.0
  %244 = vmatmul.mubr.f32.gmra.mrb[0].mxu0 %v74
  %v245 = vpop.f32.mrb[0].mxu0
  %v246 = vadd.f32 %v55, %v245
  %v247 = vpop.f32.mrb[0].mxu0
  %248 = vmatprep.mubr.f32.mxu0 0.0
  %249 = vmatmul.mubr.f32.gmra.mrb[0].mxu0 %v77
  %v250 = vpop.f32.mrb[0].mxu0
  %v251 = vadd.f32 %v55, %v250
  %v252 = vpop.f32.mrb[0].mxu0
  %253 = vmatprep.mubr.f32.mxu0 0.0
  %254 = vmatmul.mubr.f32.gmra.mrb[0].mxu0 %v80
  %v255 = vpop.f32.mrb[0].mxu0
  %v256 = vadd.f32 %v55, %v255
  %v257 = vpop.f32.mrb[0].mxu0
  %258 = vmatprep.mubr.f32.mxu0 0.0
  %259 = vmatmul.mubr.f32.gmra.mrb[0].mxu0 %v83
  %v260 = vpop.f32.mrb[0].mxu0
  %v261 = vadd.f32 %v55, %v260
  %v262 = vpop.f32.mrb[0].mxu0
  %263 = vmatprep.mubr.f32.mxu0 0.0
  %264 = vmatmul.mubr.f32.gmra.mrb[0].mxu0 %v86
  %v265 = vpop.f32.mrb[0].mxu0
  %v266 = vadd.f32 %v55, %v265
  %v267 = vpop.f32.mrb[0].mxu0
  %268 = vmatprep.mubr.f32.mxu0 0.0
  %269 = vmatmul.mubr.f32.gmra.mrb[0].mxu0 %v89
  %v270 = vpop.f32.mrb[0].mxu0
  %v271 = vadd.f32 %v55, %v270
  %v272 = vpop.f32.mrb[0].mxu0
  %273 = vmatprep.mubr.f32.mxu0 0.0
  %274 = vmatmul.mubr.f32.gmra.mrb[0].mxu0 %v92
  %v275 = vpop.f32.mrb[0].mxu0
  %v276 = vadd.f32 %v55, %v275
  %v277 = vpop.f32.mrb[0].mxu0
  %278 = vmatprep.mubr.f32.mxu0 0.0
  %279 = vmatmul.mubr.f32.gmra.mrb[0].mxu0 %v95
  %v280 = vpop.f32.mrb[0].mxu0
  %v281 = vadd.f32 %v55, %v280
  %v282 = vpop.f32.mrb[0].mxu0
  %283 = vmatprep.mubr.f32.mxu0 0.0
  %284 = vmatmul.mubr.f32.gmra.mrb[0].mxu0 %v98
  %v285 = vpop.f32.mrb[0].mxu0
  %v286 = vadd.f32 %v55, %v285
  %v287 = vpop.f32.mrb[0].mxu0
  %288 = vmatprep.mubr.f32.mxu0 0.0
  %289 = vmatmul.mubr.f32.gmra.mrb[0].mxu0 %v101
  %v290 = vpop.f32.mrb[0].mxu0
  %v291 = vadd.f32 %v55, %v290
  %v292 = vpop.f32.mrb[0].mxu0
  %293 = vmatprep.mubr.f32.mxu0 0.0
  %294 = vmatmul.mubr.f32.gmra.mrb[0].mxu0 %v104
  %v295 = vpop.f32.mrb[0].mxu0
  %v296 = vadd.f32 %v55, %v295
  %v297 = vpop.f32.mrb[0].mxu0
  %298 = vmatprep.mubr.f32.mxu0 0.0
  %299 = vmatmul.mubr.f32.gmra.mrb[0].mxu0 %v107
  %v300 = vpop.f32.mrb[0].mxu0
  %v301 = vadd.f32 %v55, %v300
  %v302 = vpop.f32.mrb[0].mxu0
  %303 = vmatprep.mubr.f32.mxu0 0.0
  %304 = vmatmul.mubr.f32.gmra.mrb[0].mxu0 %v110
  %v305 = vpop.f32.mrb[0].mxu0
  %v306 = vadd.f32 %v55, %v305
  %v307 = vpop.f32.mrb[0].mxu0
  %308 = vmatprep.mubr.f32.mxu0 0.0
  %309 = vmatmul.mubr.f32.gmra.mrb[0].mxu0 %v113
  %v310 = vpop.f32.mrb[0].mxu0
  %v311 = vadd.f32 %v55, %v310
  %v312 = vpop.f32.mrb[0].mxu0
  %313 = vmatprep.mubr.f32.mxu0 0.0
  %314 = vmatmul.mubr.f32.gmra.mrb[0].mxu0 %v116
  %v315 = vpop.f32.mrb[0].mxu0
  %v316 = vadd.f32 %v55, %v315
  %v317 = vpop.f32.mrb[0].mxu0
  %318 = vmatprep.mubr.f32.mxu0 0.0
  %319 = vmatmul.mubr.f32.gmra.mrb[0].mxu0 %v119
  %v320 = vpop.f32.mrb[0].mxu0
  %v321 = vadd.f32 %v55, %v320
  %v322 = vpop.f32.mrb[0].mxu0
  %323 = vmatprep.mubr.f32.mxu0 0.0
  %324 = vmatmul.mubr.f32.gmra.mrb[0].mxu0 %v122
  %v325 = vpop.f32.mrb[0].mxu0
  %v326 = vadd.f32 %v55, %v325
  %v327 = vpop.f32.mrb[0].mxu0
  %328 = vmatprep.mubr.f32.mxu0 0.0
  %329 = vmatmul.mubr.f32.gmra.mrb[0].mxu0 %v125
  %v330 = vpop.f32.mrb[0].mxu0
  %v331 = vadd.f32 %v55, %v330
  %v332 = vpop.f32.mrb[0].mxu0
  %333 = vmatprep.mubr.f32.mxu0 0.0
  %334 = vmatmul.mubr.f32.gmra.mrb[0].mxu0 %v128
  %v335 = vpop.f32.mrb[0].mxu0
  %v336 = vadd.f32 %v55, %v335
  %v337 = vpop.f32.mrb[0].mxu0
  %338 = vmatprep.mubr.f32.mxu0 0.0
  %339 = vmatmul.mubr.f32.gmra.mrb[0].mxu0 %v131
  %v340 = vpop.f32.mrb[0].mxu0
  %v341 = vadd.f32 %v55, %v340
  %v342 = vpop.f32.mrb[0].mxu0
  %343 = vmatprep.mubr.f32.mxu0 0.0
  %344 = vmatmul.mubr.f32.gmra.mrb[0].mxu0 %v134
  %v345 = vpop.f32.mrb[0].mxu0
  %v346 = vadd.f32 %v55, %v345
  %v347 = vpop.f32.mrb[0].mxu0
  %348 = vmatprep.mubr.f32.mxu0 0.0
  %349 = vmatmul.mubr.f32.gmra.mrb[0].mxu0 %v137
  %v350 = vpop.f32.mrb[0].mxu0
  %v351 = vadd.f32 %v55, %v350
  %v352 = vpop.f32.mrb[0].mxu0
  %353 = vmatprep.mubr.f32.mxu0 0.0
  %354 = vmatmul.mubr.f32.gmra.mrb[0].mxu0 %v140
  %v355 = vpop.f32.mrb[0].mxu0
  %v356 = vadd.f32 %v55, %v355
  %v357 = vpop.f32.mrb[0].mxu0
  %358 = vmatprep.mubr.f32.mxu0 0.0
  %359 = vmatmul.mubr.f32.gmra.mrb[0].mxu0 %v143
  %v360 = vpop.f32.mrb[0].mxu0
  %v361 = vadd.f32 %v55, %v360
  %v362 = vpop.f32.mrb[0].mxu0
  %363 = vmatprep.mubr.f32.mxu0 0.0
  %364 = vmatmul.mubr.f32.gmra.mrb[0].mxu0 %v146
  %v365 = vpop.f32.mrb[0].mxu0
  %v366 = vadd.f32 %v55, %v365
  %v367 = vpop.f32.mrb[0].mxu0
  %368 = vmatprep.mubr.f32.mxu0 0.0
  %369 = vmatmul.mubr.f32.gmra.mrb[0].mxu0 %v149
  %v370 = vpop.f32.mrb[0].mxu0
  %v371 = vadd.f32 %v55, %v370
  %v372 = vpop.f32.mrb[0].mxu0
  %373 = vmatprep.mubr.f32.mxu0 0.0
  %374 = vmatmul.mubr.f32.gmra.mrb[0].mxu0 %v152
  %v375 = vpop.f32.mrb[0].mxu0
  %v376 = vadd.f32 %v55, %v375
  %v377 = vpop.f32.mrb[0].mxu0
  %378 = vdwg.mxu0
  %vm379 = vcmask 261120
  %380 = vst.msk [vmem:[%s3] sm:$0xff] %vm379, %v221
  %381 = vst.msk [vmem:[%s3 + $0x8] sm:$0xff] %vm379, %v226
  %382 = vst.msk [vmem:[%s3 + $0x10] sm:$0xff] %vm379, %v231
  %383 = vst.msk [vmem:[%s3 + $0x18] sm:$0xff] %vm379, %v236
  %384 = vst.msk [vmem:[%s3 + $0x20] sm:$0xff] %vm379, %v241
  %385 = vst.msk [vmem:[%s3 + $0x28] sm:$0xff] %vm379, %v246
  %386 = vst.msk [vmem:[%s3 + $0x30] sm:$0xff] %vm379, %v251
  %387 = vst.msk [vmem:[%s3 + $0x38] sm:$0xff] %vm379, %v256
  %388 = vst.msk [vmem:[%s3 + $0x40] sm:$0xff] %vm379, %v261
  %389 = vst.msk [vmem:[%s3 + $0x48] sm:$0xff] %vm379, %v266
  %390 = vst.msk [vmem:[%s3 + $0x50] sm:$0xff] %vm379, %v271
  %391 = vst.msk [vmem:[%s3 + $0x58] sm:$0xff] %vm379, %v276
  %392 = vst.msk [vmem:[%s3 + $0x60] sm:$0xff] %vm379, %v281
  %393 = vst.msk [vmem:[%s3 + $0x68] sm:$0xff] %vm379, %v286
  %394 = vst.msk [vmem:[%s3 + $0x70] sm:$0xff] %vm379, %v291
  %395 = vst.msk [vmem:[%s3 + $0x78] sm:$0xff] %vm379, %v296
  %396 = vst.msk [vmem:[%s3 + $0x80] sm:$0xff] %vm379, %v301
  %397 = vst.msk [vmem:[%s3 + $0x88] sm:$0xff] %vm379, %v306
  %398 = vst.msk [vmem:[%s3 + $0x90] sm:$0xff] %vm379, %v311
  %399 = vst.msk [vmem:[%s3 + $0x98] sm:$0xff] %vm379, %v316
  %400 = vst.msk [vmem:[%s3 + $0xa0] sm:$0xff] %vm379, %v321
  %401 = vst.msk [vmem:[%s3 + $0xa8] sm:$0xff] %vm379, %v326
  %402 = vst.msk [vmem:[%s3 + $0xb0] sm:$0xff] %vm379, %v331
  %403 = vst.msk [vmem:[%s3 + $0xb8] sm:$0xff] %vm379, %v336
  %404 = vst.msk [vmem:[%s3 + $0xc0] sm:$0xff] %vm379, %v341
  %405 = vst.msk [vmem:[%s3 + $0xc8] sm:$0xff] %vm379, %v346
  %406 = vst.msk [vmem:[%s3 + $0xd0] sm:$0xff] %vm379, %v351
  %407 = vst.msk [vmem:[%s3 + $0xd8] sm:$0xff] %vm379, %v356
  %408 = vst.msk [vmem:[%s3 + $0xe0] sm:$0xff] %vm379, %v361
  %409 = vst.msk [vmem:[%s3 + $0xe8] sm:$0xff] %vm379, %v366
  %410 = vst.msk [vmem:[%s3 + $0xf0] sm:$0xff] %vm379, %v371
  %411 = vst.msk [vmem:[%s3 + $0xf8] sm:$0xff] %vm379, %v376
  %v412 = vmul.f32 %v221, %v221
  %v413 = vmul.f32 %v226, %v226
  %v414 = vmul.f32 %v231, %v231
  %v415 = vmul.f32 %v236, %v236
  %v416 = vmul.f32 %v241, %v241
  %v417 = vmul.f32 %v246, %v246
  %v418 = vmul.f32 %v251, %v251
  %v419 = vmul.f32 %v256, %v256
  %v420 = vmul.f32 %v261, %v261
  %v421 = vmul.f32 %v266, %v266
  %v422 = vmul.f32 %v271, %v271
  %v423 = vmul.f32 %v276, %v276
  %v424 = vmul.f32 %v281, %v281
  %v425 = vmul.f32 %v286, %v286
  %v426 = vmul.f32 %v291, %v291
  %v427 = vmul.f32 %v296, %v296
  %v428 = vmul.f32 %v301, %v301
  %v429 = vmul.f32 %v306, %v306
  %v430 = vmul.f32 %v311, %v311
  %v431 = vmul.f32 %v316, %v316
  %v432 = vmul.f32 %v321, %v321
  %v433 = vmul.f32 %v326, %v326
  %v434 = vmul.f32 %v331, %v331
  %v435 = vmul.f32 %v336, %v336
  %v436 = vmul.f32 %v341, %v341
  %v437 = vmul.f32 %v346, %v346
  %v438 = vmul.f32 %v351, %v351
  %v439 = vmul.f32 %v356, %v356
  %v440 = vmul.f32 %v361, %v361
  %v441 = vmul.f32 %v366, %v366
  %v442 = vmul.f32 %v371, %v371
  %v443 = vmul.f32 %v376, %v376
  %v444 = vsel %vm379, %v412, 0.0
  %445 = vadd.xlane.f32.xlu0 %v444
  %v446 = vpop.xlane.xlu0 %445
  %v447 = vsel %vm379, %v413, 0.0
  %448 = vadd.xlane.f32.xlu0 %v447
  %v449 = vpop.xlane.xlu0 %448
  %v450 = vsel %vm379, %v414, 0.0
  %451 = vadd.xlane.f32.xlu0 %v450
  %v452 = vpop.xlane.xlu0 %451
  %v453 = vsel %vm379, %v415, 0.0
  %454 = vadd.xlane.f32.xlu0 %v453
  %v455 = vpop.xlane.xlu0 %454
  %v456 = vsel %vm379, %v416, 0.0
  %457 = vadd.xlane.f32.xlu0 %v456
  %v458 = vpop.xlane.xlu0 %457
  %v459 = vsel %vm379, %v417, 0.0
  %460 = vadd.xlane.f32.xlu0 %v459
  %v461 = vpop.xlane.xlu0 %460
  %v462 = vsel %vm379, %v418, 0.0
  %463 = vadd.xlane.f32.xlu0 %v462
  %v464 = vpop.xlane.xlu0 %463
  %v465 = vsel %vm379, %v419, 0.0
  %466 = vadd.xlane.f32.xlu0 %v465
  %v467 = vpop.xlane.xlu0 %466
  %v468 = vsel %vm379, %v420, 0.0
  %469 = vadd.xlane.f32.xlu0 %v468
  %v470 = vpop.xlane.xlu0 %469
  %v471 = vsel %vm379, %v421, 0.0
  %472 = vadd.xlane.f32.xlu0 %v471
  %v473 = vpop.xlane.xlu0 %472
  %v474 = vsel %vm379, %v422, 0.0
  %475 = vadd.xlane.f32.xlu0 %v474
  %v476 = vpop.xlane.xlu0 %475
  %v477 = vsel %vm379, %v423, 0.0
  %478 = vadd.xlane.f32.xlu0 %v477
  %v479 = vpop.xlane.xlu0 %478
  %v480 = vsel %vm379, %v424, 0.0
  %481 = vadd.xlane.f32.xlu0 %v480
  %v482 = vpop.xlane.xlu0 %481
  %v483 = vsel %vm379, %v425, 0.0
  %484 = vadd.xlane.f32.xlu0 %v483
  %v485 = vpop.xlane.xlu0 %484
  %v486 = vsel %vm379, %v426, 0.0
  %487 = vadd.xlane.f32.xlu0 %v486
  %v488 = vpop.xlane.xlu0 %487
  %v489 = vsel %vm379, %v427, 0.0
  %490 = vadd.xlane.f32.xlu0 %v489
  %v491 = vpop.xlane.xlu0 %490
  %v492 = vsel %vm379, %v428, 0.0
  %493 = vadd.xlane.f32.xlu0 %v492
  %v494 = vpop.xlane.xlu0 %493
  %v495 = vsel %vm379, %v429, 0.0
  %496 = vadd.xlane.f32.xlu0 %v495
  %v497 = vpop.xlane.xlu0 %496
  %v498 = vsel %vm379, %v430, 0.0
  %499 = vadd.xlane.f32.xlu0 %v498
  %v500 = vpop.xlane.xlu0 %499
  %v501 = vsel %vm379, %v431, 0.0
  %502 = vadd.xlane.f32.xlu0 %v501
  %v503 = vpop.xlane.xlu0 %502
  %v504 = vsel %vm379, %v432, 0.0
  %505 = vadd.xlane.f32.xlu0 %v504
  %v506 = vpop.xlane.xlu0 %505
  %v507 = vsel %vm379, %v433, 0.0
  %508 = vadd.xlane.f32.xlu0 %v507
  %v509 = vpop.xlane.xlu0 %508
  %v510 = vsel %vm379, %v434, 0.0
  %511 = vadd.xlane.f32.xlu0 %v510
  %v512 = vpop.xlane.xlu0 %511
  %v513 = vsel %vm379, %v435, 0.0
  %514 = vadd.xlane.f32.xlu0 %v513
  %v515 = vpop.xlane.xlu0 %514
  %v516 = vsel %vm379, %v436, 0.0
  %517 = vadd.xlane.f32.xlu0 %v516
  %v518 = vpop.xlane.xlu0 %517
  %v519 = vsel %vm379, %v437, 0.0
  %520 = vadd.xlane.f32.xlu0 %v519
  %v521 = vpop.xlane.xlu0 %520
  %v522 = vsel %vm379, %v438, 0.0
  %523 = vadd.xlane.f32.xlu0 %v522
  %v524 = vpop.xlane.xlu0 %523
  %v525 = vsel %vm379, %v439, 0.0
  %526 = vadd.xlane.f32.xlu0 %v525
  %v527 = vpop.xlane.xlu0 %526
  %v528 = vsel %vm379, %v440, 0.0
  %529 = vadd.xlane.f32.xlu0 %v528
  %v530 = vpop.xlane.xlu0 %529
  %v531 = vsel %vm379, %v441, 0.0
  %532 = vadd.xlane.f32.xlu0 %v531
  %v533 = vpop.xlane.xlu0 %532
  %v534 = vsel %vm379, %v442, 0.0
  %535 = vadd.xlane.f32.xlu0 %v534
  %v536 = vpop.xlane.xlu0 %535
  %v537 = vsel %vm379, %v443, 0.0
  %538 = vadd.xlane.f32.xlu0 %v537
  %v539 = vpop.xlane.xlu0 %538
  %v540 = vmax.f32 %v446, 1e-24
  %v541 = vmax.f32 %v449, 1e-24
  %v542 = vmax.f32 %v452, 1e-24
  %v543 = vmax.f32 %v455, 1e-24
  %v544 = vmax.f32 %v458, 1e-24
  %v545 = vmax.f32 %v461, 1e-24
  %v546 = vmax.f32 %v464, 1e-24
  %v547 = vmax.f32 %v467, 1e-24
  %v548 = vmax.f32 %v470, 1e-24
  %v549 = vmax.f32 %v473, 1e-24
  %v550 = vmax.f32 %v476, 1e-24
  %v551 = vmax.f32 %v479, 1e-24
  %v552 = vmax.f32 %v482, 1e-24
  %v553 = vmax.f32 %v485, 1e-24
  %v554 = vmax.f32 %v488, 1e-24
  %v555 = vmax.f32 %v491, 1e-24
  %v556 = vmax.f32 %v494, 1e-24
  %v557 = vmax.f32 %v497, 1e-24
  %v558 = vmax.f32 %v500, 1e-24
  %v559 = vmax.f32 %v503, 1e-24
  %v560 = vmax.f32 %v506, 1e-24
  %v561 = vmax.f32 %v509, 1e-24
  %v562 = vmax.f32 %v512, 1e-24
  %v563 = vmax.f32 %v515, 1e-24
  %v564 = vmax.f32 %v518, 1e-24
  %v565 = vmax.f32 %v521, 1e-24
  %v566 = vmax.f32 %v524, 1e-24
  %v567 = vmax.f32 %v527, 1e-24
  %v568 = vmax.f32 %v530, 1e-24
  %v569 = vmax.f32 %v533, 1e-24
  %v570 = vmax.f32 %v536, 1e-24
  %v571 = vmax.f32 %v539, 1e-24
  %v572 = vrsqrt.pop %v540
  %v573 = vrsqrt.pop %v541
  %v574 = vrsqrt.pop %v542
  %v575 = vrsqrt.pop %v543
  %v576 = vrsqrt.pop %v544
  %v577 = vrsqrt.pop %v545
  %v578 = vrsqrt.pop %v546
  %v579 = vrsqrt.pop %v547
  %v580 = vrsqrt.pop %v548
  %v581 = vrsqrt.pop %v549
  %v582 = vrsqrt.pop %v550
  %v583 = vrsqrt.pop %v551
  %v584 = vrsqrt.pop %v552
  %v585 = vrsqrt.pop %v553
  %v586 = vrsqrt.pop %v554
  %v587 = vrsqrt.pop %v555
  %v588 = vrsqrt.pop %v556
  %v589 = vrsqrt.pop %v557
  %v590 = vrsqrt.pop %v558
  %v591 = vrsqrt.pop %v559
  %v592 = vrsqrt.pop %v560
  %v593 = vrsqrt.pop %v561
  %v594 = vrsqrt.pop %v562
  %v595 = vrsqrt.pop %v563
  %v596 = vrsqrt.pop %v564
  %v597 = vrsqrt.pop %v565
  %v598 = vrsqrt.pop %v566
  %v599 = vrsqrt.pop %v567
  %v600 = vrsqrt.pop %v568
  %v601 = vrsqrt.pop %v569
  %v602 = vrsqrt.pop %v570
  %v603 = vrsqrt.pop %v571
  %v604 = vmul.f32 %v221, %v572
  %v605 = vmul.f32 %v226, %v573
  %v606 = vmul.f32 %v231, %v574
  %v607 = vmul.f32 %v236, %v575
  %v608 = vmul.f32 %v241, %v576
  %v609 = vmul.f32 %v246, %v577
  %v610 = vmul.f32 %v251, %v578
  %v611 = vmul.f32 %v256, %v579
  %v612 = vmul.f32 %v261, %v580
  %v613 = vmul.f32 %v266, %v581
  %v614 = vmul.f32 %v271, %v582
  %v615 = vmul.f32 %v276, %v583
  %v616 = vmul.f32 %v281, %v584
  %v617 = vmul.f32 %v286, %v585
  %v618 = vmul.f32 %v291, %v586
  %v619 = vmul.f32 %v296, %v587
  %v620 = vmul.f32 %v301, %v588
  %v621 = vmul.f32 %v306, %v589
  %v622 = vmul.f32 %v311, %v590
  %v623 = vmul.f32 %v316, %v591
  %v624 = vmul.f32 %v321, %v592
  %v625 = vmul.f32 %v326, %v593
  %v626 = vmul.f32 %v331, %v594
  %v627 = vmul.f32 %v336, %v595
  %v628 = vmul.f32 %v341, %v596
  %v629 = vmul.f32 %v346, %v597
  %v630 = vmul.f32 %v351, %v598
  %v631 = vmul.f32 %v356, %v599
  %v632 = vmul.f32 %v361, %v600
  %v633 = vmul.f32 %v366, %v601
  %v634 = vmul.f32 %v371, %v602
  %v635 = vmul.f32 %v376, %v603
  %v636 = vpack.c.bf16 %v605, %v604
  %v637 = vpack.c.bf16 %v607, %v606
  %v638 = vpack.c.bf16 %v609, %v608
  %v639 = vpack.c.bf16 %v611, %v610
  %v640 = vpack.c.bf16 %v613, %v612
  %v641 = vpack.c.bf16 %v615, %v614
  %v642 = vpack.c.bf16 %v617, %v616
  %v643 = vpack.c.bf16 %v619, %v618
  %v644 = vpack.c.bf16 %v621, %v620
  %v645 = vpack.c.bf16 %v623, %v622
  %v646 = vpack.c.bf16 %v625, %v624
  %v647 = vpack.c.bf16 %v627, %v626
  %v648 = vpack.c.bf16 %v629, %v628
  %v649 = vpack.c.bf16 %v631, %v630
  %v650 = vpack.c.bf16 %v633, %v632
  %v651 = vpack.c.bf16 %v635, %v634
  %v668 = vunpack.c.l.b16 %v636
  %v669 = vunpack.c.h.b16 %v636
  %v670 = vunpack.c.l.b16 %v637
  %v671 = vunpack.c.h.b16 %v637
  %v672 = vunpack.c.l.b16 %v638
  %v673 = vunpack.c.h.b16 %v638
  %v674 = vunpack.c.l.b16 %v639
  %v675 = vunpack.c.h.b16 %v639
  %v676 = vunpack.c.l.b16 %v640
  %v677 = vunpack.c.h.b16 %v640
  %v678 = vunpack.c.l.b16 %v641
  %v679 = vunpack.c.h.b16 %v641
  %v680 = vunpack.c.l.b16 %v642
  %v681 = vunpack.c.h.b16 %v642
  %v682 = vunpack.c.l.b16 %v643
  %v683 = vunpack.c.h.b16 %v643
  %v684 = vunpack.c.l.b16 %v644
  %v685 = vunpack.c.h.b16 %v644
  %v686 = vunpack.c.l.b16 %v645
  %v687 = vunpack.c.h.b16 %v645
  %v688 = vunpack.c.l.b16 %v646
  %v689 = vunpack.c.h.b16 %v646
  %v690 = vunpack.c.l.b16 %v647
  %v691 = vunpack.c.h.b16 %v647
  %v692 = vunpack.c.l.b16 %v648
  %v693 = vunpack.c.h.b16 %v648
  %v694 = vunpack.c.l.b16 %v649
  %v695 = vunpack.c.h.b16 %v649
  %v696 = vunpack.c.l.b16 %v650
  %v697 = vunpack.c.h.b16 %v650
  %v698 = vunpack.c.l.b16 %v651
  %v699 = vunpack.c.h.b16 %v651
  %v700 = vpack.c.b16 %v668, %v668
  %v701 = vpack.c.b16 %v669, %v669
  %v702 = vpack.c.b16 %v670, %v670
  %v703 = vpack.c.b16 %v671, %v671
  %v704 = vpack.c.b16 %v672, %v672
  %v705 = vpack.c.b16 %v673, %v673
  %v706 = vpack.c.b16 %v674, %v674
  %v707 = vpack.c.b16 %v675, %v675
  %v708 = vpack.c.b16 %v676, %v676
  %v709 = vpack.c.b16 %v677, %v677
  %v710 = vpack.c.b16 %v678, %v678
  %v711 = vpack.c.b16 %v679, %v679
  %v712 = vpack.c.b16 %v680, %v680
  %v713 = vpack.c.b16 %v681, %v681
  %v714 = vpack.c.b16 %v682, %v682
  %v715 = vpack.c.b16 %v683, %v683
  %v716 = vpack.c.b16 %v684, %v684
  %v717 = vpack.c.b16 %v685, %v685
  %v718 = vpack.c.b16 %v686, %v686
  %v719 = vpack.c.b16 %v687, %v687
  %v720 = vpack.c.b16 %v688, %v688
  %v721 = vpack.c.b16 %v689, %v689
  %v722 = vpack.c.b16 %v690, %v690
  %v723 = vpack.c.b16 %v691, %v691
  %v724 = vpack.c.b16 %v692, %v692
  %v725 = vpack.c.b16 %v693, %v693
  %v726 = vpack.c.b16 %v694, %v694
  %v727 = vpack.c.b16 %v695, %v695
  %v728 = vpack.c.b16 %v696, %v696
  %v729 = vpack.c.b16 %v697, %v697
  %v730 = vpack.c.b16 %v698, %v698
  %v731 = vpack.c.b16 %v699, %v699
  %vm764 = vcmask 257024
  %765 = vst.msk [vmem:[%s4] sm:$0xf] %vm764, %v700
  %766 = vst.msk [vmem:[%s4 + $0x4] sm:$0xf] %vm764, %v701
  %767 = vst.msk [vmem:[%s4 + $0x8] sm:$0xf] %vm764, %v702
  %768 = vst.msk [vmem:[%s4 + $0xc] sm:$0xf] %vm764, %v703
  %769 = vst.msk [vmem:[%s4 + $0x10] sm:$0xf] %vm764, %v704
  %770 = vst.msk [vmem:[%s4 + $0x14] sm:$0xf] %vm764, %v705
  %771 = vst.msk [vmem:[%s4 + $0x18] sm:$0xf] %vm764, %v706
  %772 = vst.msk [vmem:[%s4 + $0x1c] sm:$0xf] %vm764, %v707
  %773 = vst.msk [vmem:[%s4 + $0x20] sm:$0xf] %vm764, %v708
  %774 = vst.msk [vmem:[%s4 + $0x24] sm:$0xf] %vm764, %v709
  %775 = vst.msk [vmem:[%s4 + $0x28] sm:$0xf] %vm764, %v710
  %776 = vst.msk [vmem:[%s4 + $0x2c] sm:$0xf] %vm764, %v711
  %777 = vst.msk [vmem:[%s4 + $0x30] sm:$0xf] %vm764, %v712
  %778 = vst.msk [vmem:[%s4 + $0x34] sm:$0xf] %vm764, %v713
  %779 = vst.msk [vmem:[%s4 + $0x38] sm:$0xf] %vm764, %v714
  %780 = vst.msk [vmem:[%s4 + $0x3c] sm:$0xf] %vm764, %v715
  %781 = vst.msk [vmem:[%s4 + $0x40] sm:$0xf] %vm764, %v716
  %782 = vst.msk [vmem:[%s4 + $0x44] sm:$0xf] %vm764, %v717
  %783 = vst.msk [vmem:[%s4 + $0x48] sm:$0xf] %vm764, %v718
  %784 = vst.msk [vmem:[%s4 + $0x4c] sm:$0xf] %vm764, %v719
  %785 = vst.msk [vmem:[%s4 + $0x50] sm:$0xf] %vm764, %v720
  %786 = vst.msk [vmem:[%s4 + $0x54] sm:$0xf] %vm764, %v721
  %787 = vst.msk [vmem:[%s4 + $0x58] sm:$0xf] %vm764, %v722
  %788 = vst.msk [vmem:[%s4 + $0x5c] sm:$0xf] %vm764, %v723
  %789 = vst.msk [vmem:[%s4 + $0x60] sm:$0xf] %vm764, %v724
  %790 = vst.msk [vmem:[%s4 + $0x64] sm:$0xf] %vm764, %v725
  %791 = vst.msk [vmem:[%s4 + $0x68] sm:$0xf] %vm764, %v726
  %792 = vst.msk [vmem:[%s4 + $0x6c] sm:$0xf] %vm764, %v727
  %793 = vst.msk [vmem:[%s4 + $0x70] sm:$0xf] %vm764, %v728
  %794 = vst.msk [vmem:[%s4 + $0x74] sm:$0xf] %vm764, %v729
  %795 = vst.msk [vmem:[%s4 + $0x78] sm:$0xf] %vm764, %v730
  %796 = vst.msk [vmem:[%s4 + $0x7c] sm:$0xf] %vm764, %v731
  // Predicated region
  $region14: #{tpu_custom_call.1} parent=0 // pred_check
    _
  $region15: #{tpu_custom_call.1} parent=0 // pred_check_branch
    %798 = sbr.rel (0) target = $region17
  $region16: #{tpu_custom_call.1} parent=0 // pred_region
    _
  $region17: #{tpu_custom_call.1} parent=0 // pred_fallthru
    _
  // Predicated region
  $region18: #{tpu_custom_call.1} parent=0 // pred_check
    _
  $region19: #{tpu_custom_call.1} parent=0 // pred_check_branch
    %800 = sbr.rel (0) target = $region21
  $region20: #{tpu_custom_call.1} parent=0 // pred_region
    _
  $region21: #{tpu_custom_call.1} parent=0 // pred_fallthru
    _
  // Predicated region
  $region22: #{tpu_custom_call.1} parent=0 // pred_check
    _
  $region23: #{tpu_custom_call.1} parent=0 // pred_check_branch
    %802 = sbr.rel (0) target = $region25
  $region24: #{tpu_custom_call.1} parent=0 // pred_region
    _
  $region25: #{tpu_custom_call.1} parent=0 // pred_fallthru
    _
  // Predicated region
  $region26: #{tpu_custom_call.1} parent=0 // pred_check
    _
  $region27: #{tpu_custom_call.1} parent=0 // pred_check_branch
    %804 = sbr.rel (0) target = $region29
  $region28: #{tpu_custom_call.1} parent=0 // pred_region
    _
  $region29: #{tpu_custom_call.1} parent=0 // pred_fallthru
    _

</llo_original>
